<compile_context>
chip_gen: v7x
topology: tpu7x:2x2x1
jax: 0.10.0
libtpu: 0.0.40
codegen_flags: <defaults>
</compile_context>

<pallas_src>
import jax
import jax.numpy as jnp
from jax.experimental import pallas as pl
from jax.experimental.pallas import tpu as pltpu


def _round_up(x, m):
    return ((x + m - 1) // m) * m


def _geom_encoder_kernel(x_ref,
                         w1_ref, b1_ref,
                         w2_ref, b2_ref,
                         w3_ref, b3_ref,
                         out_ref):
    """One batch tile of the fused 3-layer MLP forward."""
    # bf16 tile from HBM -> cast once to f32 (keeps all VPU math in f32).
    x = x_ref[...].astype(jnp.float32)

    # Layer 1: Linear(N, N1) + ReLU (bias folded into the max)
    h = jnp.dot(x, w1_ref[...], preferred_element_type=jnp.float32)
    h = jnp.maximum(h + b1_ref[...], 0.0)

    # Layer 2: Linear(N1, N2) + ReLU
    h = jnp.dot(h, w2_ref[...], preferred_element_type=jnp.float32)
    h = jnp.maximum(h + b2_ref[...], 0.0)

    # Layer 3: Linear(N2, 4), no activation -> logits
    h = jnp.dot(h, w3_ref[...], preferred_element_type=jnp.float32) + b3_ref[...]

    out_ref[...] = h.astype(out_ref.dtype)


def geom_encoder_forward(x, params, *, batch_tile=512):
    """Forward pass of geomEncoder.

    x:      (B, C, H, W) or (B, N) float array.
    params: [(W1, b1), (W2, b2), (W3, b3)] with W stored (in, out) —
            transposed vs. torch — and b stored (1, out).
    Returns: (B, 4) float32 logits.
    """
    B = x.shape[0]
    x_flat = x.reshape(B, -1)                 # nn.Flatten()
    N = x_flat.shape[1]
    (w1, b1), (w2, b2), (w3, b3) = params
    n1, n2, n_out = w1.shape[1], w2.shape[1], w3.shape[1]

    # bf16 HBM I/O for activations (mem-bound); weights stay f32 (tiny, one DMA).
    x_io = x_flat.astype(jnp.bfloat16)

    # Batch tile: multiple of 8 sublanes, capped at batch_tile; pad batch so
    # the grid divides evenly (padded rows are sliced off afterwards).
    tb = min(batch_tile, _round_up(B, 8))
    b_pad = _round_up(B, tb)
    if b_pad != B:
        x_io = jnp.pad(x_io, ((0, b_pad - B), (0, 0)))
    grid = (b_pad // tb,)

    def batch_spec(last_dim):
        return pl.BlockSpec((tb, last_dim), lambda i: (i, 0))

    def resident_spec(a):
        # full-array block, constant block index -> DMA'd once, VMEM-resident
        return pl.BlockSpec(a.shape, lambda i: (0, 0))

    flops = 2 * b_pad * (N * n1 + n1 * n2 + n2 * n_out)
    bytes_accessed = (
        x_io.size * x_io.dtype.itemsize          # activations in (bf16)
        + b_pad * n_out * 4                      # logits out (f32)
        + sum(int(a.size) * a.dtype.itemsize     # weights + biases (f32)
              for pair in params for a in pair))

    out = pl.pallas_call(
        _geom_encoder_kernel,
        out_shape=jax.ShapeDtypeStruct((b_pad, n_out), jnp.float32),
        grid=grid,
        in_specs=[batch_spec(N),
                  resident_spec(w1), resident_spec(b1),
                  resident_spec(w2), resident_spec(b2),
                  resident_spec(w3), resident_spec(b3)],
        out_specs=pl.BlockSpec((tb, n_out), lambda i: (i, 0)),
        compiler_params=pltpu.CompilerParams(
            dimension_semantics=("parallel",),        # v7x: shard batch over 2 TCs
            vmem_limit_bytes=32 * 1024 * 1024),       # explicit; safe on v7x 64 MiB
        cost_estimate=pl.CostEstimate(flops=flops,
                                      transcendentals=0,
                                      bytes_accessed=bytes_accessed),
    )(x_io, w1, b1, w2, b2, w3, b3)

    return out[:B]


def init_params(key, dims):
    """PyTorch-Linear-style init: U(-1/sqrt(fan_in), 1/sqrt(fan_in)).

    dims = [N, N1, N2, 4] -> 3 (W, b) pairs; W stored (in, out), b (1, out).
    """
    params = []
    for i in range(len(dims) - 1):
        fan_in, fan_out = dims[i], dims[i + 1]
        key, kw, kb = jax.random.split(key, 3)
        bound = 1.0 / (fan_in ** 0.5)
        w = jax.random.uniform(kw, (fan_in, fan_out), jnp.float32, -bound, bound)
        b = jax.random.uniform(kb, (1, fan_out), jnp.float32, -bound, bound)
        params.append((w, b))
    return params


if __name__ == "__main__":
    # Small shapes: x (B, C, H, W) = (2, 4, 16, 16) -> flatten -> N = 1024
    B, C, H, W = 2, 4, 16, 16
    N = C * H * W            # 1024
    N1, N2 = 32, 16          # geomEncoder(N, N1, N2); final layer is Linear(N2, 4)

    key = jax.random.PRNGKey(0)
    key, kx = jax.random.split(key)
    x = jax.random.normal(kx, (B, C, H, W), dtype=jnp.float32)

    params = init_params(key, [N, N1, N2, 4])

    logits = geom_encoder_forward(x, params)
    logits = jax.block_until_ready(logits)

    # Pure-JAX reference of the same forward (on the same bf16-rounded input
    # the kernel sees for its HBM I/O).
    xr = x.reshape(B, -1).astype(jnp.bfloat16).astype(jnp.float32)
    ref = xr
    for i, (w, b) in enumerate(params):
        ref = jnp.dot(ref, w, precision=jax.lax.Precision.HIGHEST) + b
        if i < len(params) - 1:
            ref = jnp.maximum(ref, 0.0)

    assert logits.shape == (B, 4)
    assert jnp.allclose(logits, ref, atol=1e-2, rtol=1e-2), \
        float(jnp.max(jnp.abs(logits - ref)))

    print("KERNEL_OK")
</pallas_src>

<mosaic_0001>
module attributes {stable_mosaic.version = 11 : i64} {
  func.func @_geom_encoder_kernel(%arg0: i32, %arg1: memref<8x1024xbf16, #tpu.memory_space<vmem>>, %arg2: memref<1024x32xf32, #tpu.memory_space<vmem>>, %arg3: memref<1x32xf32, #tpu.memory_space<vmem>>, %arg4: memref<32x16xf32, #tpu.memory_space<vmem>>, %arg5: memref<1x16xf32, #tpu.memory_space<vmem>>, %arg6: memref<16x4xf32, #tpu.memory_space<vmem>>, %arg7: memref<1x4xf32, #tpu.memory_space<vmem>>, %arg8: memref<8x4xf32, #tpu.memory_space<vmem>>) attributes {dimension_semantics = [#tpu.dimension_semantics<parallel>], iteration_bounds = array<i64: 1>, scalar_prefetch = 0 : i64, scratch_operands = 0 : i64, tpu.core_type = #tpu.core_type<tc>, window_params = [{transform_indices = @transform_0, window_bounds = array<i64: 8, 1024>}, {pipeline_mode = #tpu.pipeline_mode<synchronous>, transform_indices = @transform_1, window_bounds = array<i64: 1024, 32>}, {pipeline_mode = #tpu.pipeline_mode<synchronous>, transform_indices = @transform_2, window_bounds = array<i64: 1, 32>}, {pipeline_mode = #tpu.pipeline_mode<synchronous>, transform_indices = @transform_3, window_bounds = array<i64: 32, 16>}, {pipeline_mode = #tpu.pipeline_mode<synchronous>, transform_indices = @transform_4, window_bounds = array<i64: 1, 16>}, {pipeline_mode = #tpu.pipeline_mode<synchronous>, transform_indices = @transform_5, window_bounds = array<i64: 16, 4>}, {pipeline_mode = #tpu.pipeline_mode<synchronous>, transform_indices = @transform_6, window_bounds = array<i64: 1, 4>}, {transform_indices = @transform_7, window_bounds = array<i64: 8, 4>}]} {
    %c0 = arith.constant 0 : index
    %c0_0 = arith.constant 0 : index
    %0 = vector.load %arg1[%c0, %c0_0] : memref<8x1024xbf16, #tpu.memory_space<vmem>>, vector<8x1024xbf16>
    %1 = arith.extf %0 : vector<8x1024xbf16> to vector<8x1024xf32>
    %c0_1 = arith.constant 0 : index
    %c0_2 = arith.constant 0 : index
    %2 = vector.load %arg2[%c0_1, %c0_2] : memref<1024x32xf32, #tpu.memory_space<vmem>>, vector<1024x32xf32>
    %cst = arith.constant dense<0.000000e+00> : vector<8x32xf32>
    %3 = tpu.matmul %1, %2, %cst {dimension_numbers = #tpu.dot_dimension_numbers<[1], [0], [0], [1], [0, 0, 1, 1], [], []>} : vector<8x1024xf32>, vector<1024x32xf32>, vector<8x32xf32> -> vector<8x32xf32>
    %c0_3 = arith.constant 0 : index
    %c0_4 = arith.constant 0 : index
    %4 = vector.load %arg3[%c0_3, %c0_4] : memref<1x32xf32, #tpu.memory_space<vmem>>, vector<1x32xf32>
    %5 = vector.broadcast %4 : vector<1x32xf32> to vector<8x32xf32>
    %6 = arith.addf %3, %5 : vector<8x32xf32>
    %cst_5 = arith.constant 0.000000e+00 : f32
    %7 = vector.broadcast %cst_5 : f32 to vector<8x32xf32>
    %8 = arith.maximumf %6, %7 : vector<8x32xf32>
    %c0_6 = arith.constant 0 : index
    %c0_7 = arith.constant 0 : index
    %9 = vector.load %arg4[%c0_6, %c0_7] : memref<32x16xf32, #tpu.memory_space<vmem>>, vector<32x16xf32>
    %cst_8 = arith.constant dense<0.000000e+00> : vector<8x16xf32>
    %10 = tpu.matmul %8, %9, %cst_8 {dimension_numbers = #tpu.dot_dimension_numbers<[1], [0], [0], [1], [0, 0, 1, 1], [], []>} : vector<8x32xf32>, vector<32x16xf32>, vector<8x16xf32> -> vector<8x16xf32>
    %c0_9 = arith.constant 0 : index
    %c0_10 = arith.constant 0 : index
    %11 = vector.load %arg5[%c0_9, %c0_10] : memref<1x16xf32, #tpu.memory_space<vmem>>, vector<1x16xf32>
    %12 = vector.broadcast %11 : vector<1x16xf32> to vector<8x16xf32>
    %13 = arith.addf %10, %12 : vector<8x16xf32>
    %cst_11 = arith.constant 0.000000e+00 : f32
    %14 = vector.broadcast %cst_11 : f32 to vector<8x16xf32>
    %15 = arith.maximumf %13, %14 : vector<8x16xf32>
    %c0_12 = arith.constant 0 : index
    %c0_13 = arith.constant 0 : index
    %16 = vector.load %arg6[%c0_12, %c0_13] : memref<16x4xf32, #tpu.memory_space<vmem>>, vector<16x4xf32>
    %cst_14 = arith.constant dense<0.000000e+00> : vector<8x4xf32>
    %17 = tpu.matmul %15, %16, %cst_14 {dimension_numbers = #tpu.dot_dimension_numbers<[1], [0], [0], [1], [0, 0, 1, 1], [], []>} : vector<8x16xf32>, vector<16x4xf32>, vector<8x4xf32> -> vector<8x4xf32>
    %c0_15 = arith.constant 0 : index
    %c0_16 = arith.constant 0 : index
    %18 = vector.load %arg7[%c0_15, %c0_16] : memref<1x4xf32, #tpu.memory_space<vmem>>, vector<1x4xf32>
    %19 = vector.broadcast %18 : vector<1x4xf32> to vector<8x4xf32>
    %20 = arith.addf %17, %19 : vector<8x4xf32>
    %c0_17 = arith.constant 0 : index
    %c0_18 = arith.constant 0 : index
    %21 = vector.load %arg8[%c0_17, %c0_18] : memref<8x4xf32, #tpu.memory_space<vmem>>, vector<8x4xf32>
    tpu.vector_store %arg8[%c0_17, %c0_18], %20 {strides = array<i32>} : memref<8x4xf32, #tpu.memory_space<vmem>>, vector<8x4xf32>,
    return
  }
  func.func @transform_0(%arg0: i32) -> (i32, i32) {
    %c0_i32 = arith.constant 0 : i32
    %c0_i32_0 = arith.constant 0 : i32
    return %arg0, %c0_i32 : i32, i32
  }
  func.func @transform_1(%arg0: i32) -> (i32, i32) {
    %c0_i32 = arith.constant 0 : i32
    %c0_i32_0 = arith.constant 0 : i32
    %c0_i32_1 = arith.constant 0 : i32
    return %c0_i32, %c0_i32_0 : i32, i32
  }
  func.func @transform_2(%arg0: i32) -> (i32, i32) {
    %c0_i32 = arith.constant 0 : i32
    %c0_i32_0 = arith.constant 0 : i32
    %c0_i32_1 = arith.constant 0 : i32
    return %c0_i32, %c0_i32_0 : i32, i32
  }
  func.func @transform_3(%arg0: i32) -> (i32, i32) {
    %c0_i32 = arith.constant 0 : i32
    %c0_i32_0 = arith.constant 0 : i32
    %c0_i32_1 = arith.constant 0 : i32
    return %c0_i32, %c0_i32_0 : i32, i32
  }
  func.func @transform_4(%arg0: i32) -> (i32, i32) {
    %c0_i32 = arith.constant 0 : i32
    %c0_i32_0 = arith.constant 0 : i32
    %c0_i32_1 = arith.constant 0 : i32
    return %c0_i32, %c0_i32_0 : i32, i32
  }
  func.func @transform_5(%arg0: i32) -> (i32, i32) {
    %c0_i32 = arith.constant 0 : i32
    %c0_i32_0 = arith.constant 0 : i32
    %c0_i32_1 = arith.constant 0 : i32
    return %c0_i32, %c0_i32_0 : i32, i32
  }
  func.func @transform_6(%arg0: i32) -> (i32, i32) {
    %c0_i32 = arith.constant 0 : i32
    %c0_i32_0 = arith.constant 0 : i32
    %c0_i32_1 = arith.constant 0 : i32
    return %c0_i32, %c0_i32_0 : i32, i32
  }
  func.func @transform_7(%arg0: i32) -> (i32, i32) {
    %c0_i32 = arith.constant 0 : i32
    %c0_i32_0 = arith.constant 0 : i32
    return %arg0, %c0_i32 : i32, i32
  }
}

</mosaic_0001>

<llo_original>
// kernel: tpu_custom_call.1
$region0: #{tpu_custom_call.1}
  #allocation0 [shape = 'u32[]', space=smem, size = 0x4, offset = 0x4, fixed_abs, tag = 'smem constant byte address 0x4 - core index']
  #allocation1 [shape = 'u32[144,128]{1,0:T(1,128)}', space=vmem, size = 0x12000, scoped, tag = 'internal scratch']
  %s0 = inlined_call_operand.vmem [shape: bf16[8,1024], index: 0, kind: input, shape index: {}]
  %s1 = inlined_call_operand.vmem [shape: f32[1024,32], index: 1, kind: input, shape index: {}]
  %s2 = inlined_call_operand.vmem [shape: f32[1,32], index: 2, kind: input, shape index: {}]
  %s3 = inlined_call_operand.vmem [shape: f32[32,16], index: 3, kind: input, shape index: {}]
  %s4 = inlined_call_operand.vmem [shape: f32[1,16], index: 4, kind: input, shape index: {}]
  %s5 = inlined_call_operand.vmem [shape: f32[16,4], index: 5, kind: input, shape index: {}]
  %s6 = inlined_call_operand.vmem [shape: f32[1,4], index: 6, kind: input, shape index: {}]
  %s7 = inlined_call_operand.vmem [shape: f32[8,4], index: 7, kind: output, shape index: {}]
  %s8 = sld [smem:[#allocation0]]
  $region38: #{tpu_custom_call.1} parent=0
    _
  %s10 = ssub.s32 1, %s8
  %s11 = scalar_select 0, %s10, %s8
  // Predicated region
  $region2: #{tpu_custom_call.1} parent=0 // pred_check
    _
  $region3: #{tpu_custom_call.1} parent=0 // pred_check_branch
    %13 = sbr.rel (0) target = $region5
  $region4: #{tpu_custom_call.1} parent=0 // pred_region
    _
  $region5: #{tpu_custom_call.1} parent=0 // pred_fallthru
    _
  // Predicated region
  $region6: #{tpu_custom_call.1} parent=0 // pred_check
    _
  $region7: #{tpu_custom_call.1} parent=0 // pred_check_branch
    %15 = sbr.rel (0) target = $region9
  $region8: #{tpu_custom_call.1} parent=0 // pred_region
    _
  $region9: #{tpu_custom_call.1} parent=0 // pred_fallthru
    _
  // Predicated region
  $region10: #{tpu_custom_call.1} parent=0 // pred_check
    _
  $region11: #{tpu_custom_call.1} parent=0 // pred_check_branch
    %17 = sbr.rel (0) target = $region13
  $region12: #{tpu_custom_call.1} parent=0 // pred_region
    _
  $region13: #{tpu_custom_call.1} parent=0 // pred_fallthru
    _
  // Predicated region
  $region14: #{tpu_custom_call.1} parent=0 // pred_check
    _
  $region15: #{tpu_custom_call.1} parent=0 // pred_check_branch
    %19 = sbr.rel (0) target = $region17
  $region16: #{tpu_custom_call.1} parent=0 // pred_region
    _
  $region17: #{tpu_custom_call.1} parent=0 // pred_fallthru
    _
  // Predicated region
  $region18: #{tpu_custom_call.1} parent=0 // pred_check
    _
  $region19: #{tpu_custom_call.1} parent=0 // pred_check_branch
    %21 = sbr.rel (0) target = $region21
  $region20: #{tpu_custom_call.1} parent=0 // pred_region
    _
  $region21: #{tpu_custom_call.1} parent=0 // pred_fallthru
    _
  // Predicated region
  $region22: #{tpu_custom_call.1} parent=0 // pred_check
    _
  $region23: #{tpu_custom_call.1} parent=0 // pred_check_branch
    %23 = sbr.rel (0) target = $region25
  $region24: #{tpu_custom_call.1} parent=0 // pred_region
    _
  $region25: #{tpu_custom_call.1} parent=0 // pred_fallthru
    _
  // Predicated region
  $region26: #{tpu_custom_call.1} parent=0 // pred_check
    _
  $region27: #{tpu_custom_call.1} parent=0 // pred_check_branch
    %25 = sbr.rel (0) target = $region29
  $region28: #{tpu_custom_call.1} parent=0 // pred_region
    _
  $region29: #{tpu_custom_call.1} parent=0 // pred_fallthru
    _
  %v26 = vld [vmem:[%s0] sm:$0xff]
  %v27 = vld [vmem:[%s0 + $0x8] sm:$0xff]
  %v28 = vld [vmem:[%s0 + $0x10] sm:$0xff]
  %v29 = vld [vmem:[%s0 + $0x18] sm:$0xff]
  %v30 = vunpack.c.l.bf16 %v26
  %v31 = vunpack.c.h.bf16 %v26
  %v32 = vunpack.c.l.bf16 %v27
  %v33 = vunpack.c.h.bf16 %v27
  %v34 = vunpack.c.l.bf16 %v28
  %v35 = vunpack.c.h.bf16 %v28
  %v36 = vunpack.c.l.bf16 %v29
  %v37 = vunpack.c.h.bf16 %v29
  %v38 = vld [vmem:[%s1] sm:$0xff]
  %v39 = vld [vmem:[%s1 + $0x8] sm:$0xff]
  %v40 = vld [vmem:[%s1 + $0x10] sm:$0xff]
  %v41 = vld [vmem:[%s1 + $0x18] sm:$0xff]
  %v42 = vld [vmem:[%s1 + $0x20] sm:$0xff]
  %v43 = vld [vmem:[%s1 + $0x28] sm:$0xff]
  %v44 = vld [vmem:[%s1 + $0x30] sm:$0xff]
  %v45 = vld [vmem:[%s1 + $0x38] sm:$0xff]
  %v46 = vld [vmem:[%s1 + $0x40] sm:$0xff]
  %v47 = vld [vmem:[%s1 + $0x48] sm:$0xff]
  %v48 = vld [vmem:[%s1 + $0x50] sm:$0xff]
  %v49 = vld [vmem:[%s1 + $0x58] sm:$0xff]
  %v50 = vld [vmem:[%s1 + $0x60] sm:$0xff]
  %v51 = vld [vmem:[%s1 + $0x68] sm:$0xff]
  %v52 = vld [vmem:[%s1 + $0x70] sm:$0xff]
  %v53 = vld [vmem:[%s1 + $0x78] sm:$0xff]
  %v54 = vld [vmem:[%s1 + $0x80] sm:$0xff]
  %v55 = vld [vmem:[%s1 + $0x88] sm:$0xff]
  %v56 = vld [vmem:[%s1 + $0x90] sm:$0xff]
  %v57 = vld [vmem:[%s1 + $0x98] sm:$0xff]
  %v58 = vld [vmem:[%s1 + $0xa0] sm:$0xff]
  %v59 = vld [vmem:[%s1 + $0xa8] sm:$0xff]
  %v60 = vld [vmem:[%s1 + $0xb0] sm:$0xff]
  %v61 = vld [vmem:[%s1 + $0xb8] sm:$0xff]
  %v62 = vld [vmem:[%s1 + $0xc0] sm:$0xff]
  %v63 = vld [vmem:[%s1 + $0xc8] sm:$0xff]
  %v64 = vld [vmem:[%s1 + $0xd0] sm:$0xff]
  %v65 = vld [vmem:[%s1 + $0xd8] sm:$0xff]
  %v66 = vld [vmem:[%s1 + $0xe0] sm:$0xff]
  %v67 = vld [vmem:[%s1 + $0xe8] sm:$0xff]
  %v68 = vld [vmem:[%s1 + $0xf0] sm:$0xff]
  %v69 = vld [vmem:[%s1 + $0xf8] sm:$0xff]
  %v70 = vld [vmem:[%s1 + $0x100] sm:$0xff]
  %v71 = vld [vmem:[%s1 + $0x108] sm:$0xff]
  %v72 = vld [vmem:[%s1 + $0x110] sm:$0xff]
  %v73 = vld [vmem:[%s1 + $0x118] sm:$0xff]
  %v74 = vld [vmem:[%s1 + $0x120] sm:$0xff]
  %v75 = vld [vmem:[%s1 + $0x128] sm:$0xff]
  %v76 = vld [vmem:[%s1 + $0x130] sm:$0xff]
  %v77 = vld [vmem:[%s1 + $0x138] sm:$0xff]
  %v78 = vld [vmem:[%s1 + $0x140] sm:$0xff]
  %v79 = vld [vmem:[%s1 + $0x148] sm:$0xff]
  %v80 = vld [vmem:[%s1 + $0x150] sm:$0xff]
  %v81 = vld [vmem:[%s1 + $0x158] sm:$0xff]
  %v82 = vld [vmem:[%s1 + $0x160] sm:$0xff]
  %v83 = vld [vmem:[%s1 + $0x168] sm:$0xff]
  %v84 = vld [vmem:[%s1 + $0x170] sm:$0xff]
  %v85 = vld [vmem:[%s1 + $0x178] sm:$0xff]
  %v86 = vld [vmem:[%s1 + $0x180] sm:$0xff]
  %v87 = vld [vmem:[%s1 + $0x188] sm:$0xff]
  %v88 = vld [vmem:[%s1 + $0x190] sm:$0xff]
  %v89 = vld [vmem:[%s1 + $0x198] sm:$0xff]
  %v90 = vld [vmem:[%s1 + $0x1a0] sm:$0xff]
  %v91 = vld [vmem:[%s1 + $0x1a8] sm:$0xff]
  %v92 = vld [vmem:[%s1 + $0x1b0] sm:$0xff]
  %v93 = vld [vmem:[%s1 + $0x1b8] sm:$0xff]
  %v94 = vld [vmem:[%s1 + $0x1c0] sm:$0xff]
  %v95 = vld [vmem:[%s1 + $0x1c8] sm:$0xff]
  %v96 = vld [vmem:[%s1 + $0x1d0] sm:$0xff]
  %v97 = vld [vmem:[%s1 + $0x1d8] sm:$0xff]
  %v98 = vld [vmem:[%s1 + $0x1e0] sm:$0xff]
  %v99 = vld [vmem:[%s1 + $0x1e8] sm:$0xff]
  %v100 = vld [vmem:[%s1 + $0x1f0] sm:$0xff]
  %v101 = vld [vmem:[%s1 + $0x1f8] sm:$0xff]
  %v102 = vld [vmem:[%s1 + $0x200] sm:$0xff]
  %v103 = vld [vmem:[%s1 + $0x208] sm:$0xff]
  %v104 = vld [vmem:[%s1 + $0x210] sm:$0xff]
  %v105 = vld [vmem:[%s1 + $0x218] sm:$0xff]
  %v106 = vld [vmem:[%s1 + $0x220] sm:$0xff]
  %v107 = vld [vmem:[%s1 + $0x228] sm:$0xff]
  %v108 = vld [vmem:[%s1 + $0x230] sm:$0xff]
  %v109 = vld [vmem:[%s1 + $0x238] sm:$0xff]
  %v110 = vld [vmem:[%s1 + $0x240] sm:$0xff]
  %v111 = vld [vmem:[%s1 + $0x248] sm:$0xff]
  %v112 = vld [vmem:[%s1 + $0x250] sm:$0xff]
  %v113 = vld [vmem:[%s1 + $0x258] sm:$0xff]
  %v114 = vld [vmem:[%s1 + $0x260] sm:$0xff]
  %v115 = vld [vmem:[%s1 + $0x268] sm:$0xff]
  %v116 = vld [vmem:[%s1 + $0x270] sm:$0xff]
  %v117 = vld [vmem:[%s1 + $0x278] sm:$0xff]
  %v118 = vld [vmem:[%s1 + $0x280] sm:$0xff]
  %v119 = vld [vmem:[%s1 + $0x288] sm:$0xff]
  %v120 = vld [vmem:[%s1 + $0x290] sm:$0xff]
  %v121 = vld [vmem:[%s1 + $0x298] sm:$0xff]
  %v122 = vld [vmem:[%s1 + $0x2a0] sm:$0xff]
  %v123 = vld [vmem:[%s1 + $0x2a8] sm:$0xff]
  %v124 = vld [vmem:[%s1 + $0x2b0] sm:$0xff]
  %v125 = vld [vmem:[%s1 + $0x2b8] sm:$0xff]
  %v126 = vld [vmem:[%s1 + $0x2c0] sm:$0xff]
  %v127 = vld [vmem:[%s1 + $0x2c8] sm:$0xff]
  %v128 = vld [vmem:[%s1 + $0x2d0] sm:$0xff]
  %v129 = vld [vmem:[%s1 + $0x2d8] sm:$0xff]
  %v130 = vld [vmem:[%s1 + $0x2e0] sm:$0xff]
  %v131 = vld [vmem:[%s1 + $0x2e8] sm:$0xff]
  %v132 = vld [vmem:[%s1 + $0x2f0] sm:$0xff]
  %v133 = vld [vmem:[%s1 + $0x2f8] sm:$0xff]
  %v134 = vld [vmem:[%s1 + $0x300] sm:$0xff]
  %v135 = vld [vmem:[%s1 + $0x308] sm:$0xff]
  %v136 = vld [vmem:[%s1 + $0x310] sm:$0xff]
  %v137 = vld [vmem:[%s1 + $0x318] sm:$0xff]
  %v138 = vld [vmem:[%s1 + $0x320] sm:$0xff]
  %v139 = vld [vmem:[%s1 + $0x328] sm:$0xff]
  %v140 = vld [vmem:[%s1 + $0x330] sm:$0xff]
  %v141 = vld [vmem:[%s1 + $0x338] sm:$0xff]
  %v142 = vld [vmem:[%s1 + $0x340] sm:$0xff]
  %v143 = vld [vmem:[%s1 + $0x348] sm:$0xff]
  %v144 = vld [vmem:[%s1 + $0x350] sm:$0xff]
  %v145 = vld [vmem:[%s1 + $0x358] sm:$0xff]
  %v146 = vld [vmem:[%s1 + $0x360] sm:$0xff]
  %v147 = vld [vmem:[%s1 + $0x368] sm:$0xff]
  %v148 = vld [vmem:[%s1 + $0x370] sm:$0xff]
  %v149 = vld [vmem:[%s1 + $0x378] sm:$0xff]
  %v150 = vld [vmem:[%s1 + $0x380] sm:$0xff]
  %v151 = vld [vmem:[%s1 + $0x388] sm:$0xff]
  %v152 = vld [vmem:[%s1 + $0x390] sm:$0xff]
  %v153 = vld [vmem:[%s1 + $0x398] sm:$0xff]
  %v154 = vld [vmem:[%s1 + $0x3a0] sm:$0xff]
  %v155 = vld [vmem:[%s1 + $0x3a8] sm:$0xff]
  %v156 = vld [vmem:[%s1 + $0x3b0] sm:$0xff]
  %v157 = vld [vmem:[%s1 + $0x3b8] sm:$0xff]
  %v158 = vld [vmem:[%s1 + $0x3c0] sm:$0xff]
  %v159 = vld [vmem:[%s1 + $0x3c8] sm:$0xff]
  %v160 = vld [vmem:[%s1 + $0x3d0] sm:$0xff]
  %v161 = vld [vmem:[%s1 + $0x3d8] sm:$0xff]
  %v162 = vld [vmem:[%s1 + $0x3e0] sm:$0xff]
  %v163 = vld [vmem:[%s1 + $0x3e8] sm:$0xff]
  %v164 = vld [vmem:[%s1 + $0x3f0] sm:$0xff]
  %v165 = vld [vmem:[%s1 + $0x3f8] sm:$0xff]
  %v166 = vld [vmem:[%s2] sm:$0x1]
  %v168 = vlaneseq
  %v169 = vshrl.u32 %v168, 7
  %v170 = vsub.s32 0, %v169
  %v171 = vrot.slane %v166, %v170
  %173 = vmatprep.subr.mxu0 0.0
  %174 = vmatpush1.msra.mxu0 %v38
  %175 = vmatprep.subr.mxu0 0.0
  %176 = vmatpush1.msra.mxu0 %v39
  %177 = vmatprep.subr.mxu0 0.0
  %178 = vmatpush1.msra.mxu0 %v40
  %179 = vmatprep.subr.mxu0 0.0
  %180 = vmatpush1.msra.mxu0 %v41
  %181 = vmatprep.subr.mxu0 0.0
  %182 = vmatpush1.msra.mxu0 %v42
  %183 = vmatprep.subr.mxu0 0.0
  %184 = vmatpush1.msra.mxu0 %v43
  %185 = vmatprep.subr.mxu0 0.0
  %186 = vmatpush1.msra.mxu0 %v44
  %187 = vmatprep.subr.mxu0 0.0
  %188 = vmatpush1.msra.mxu0 %v45
  %189 = vmatprep.subr.mxu0 0.0
  %190 = vmatpush1.msra.mxu0 %v46
  %191 = vmatprep.subr.mxu0 0.0
  %192 = vmatpush1.msra.mxu0 %v47
  %193 = vmatprep.subr.mxu0 0.0
  %194 = vmatpush1.msra.mxu0 %v48
  %195 = vmatprep.subr.mxu0 0.0
  %196 = vmatpush1.msra.mxu0 %v49
  %197 = vmatprep.subr.mxu0 0.0
  %198 = vmatpush1.msra.mxu0 %v50
  %199 = vmatprep.subr.mxu0 0.0
  %200 = vmatpush1.msra.mxu0 %v51
  %201 = vmatprep.subr.mxu0 0.0
  %202 = vmatpush1.msra.mxu0 %v52
  %203 = vmatprep.subr.mxu0 0.0
  %204 = vmatpush1.msra.mxu0 %v53
  %205 = vmatprep.subr.mxu0 0.0
  %206 = vmatpush1.msra.mxu0 %v54
  %207 = vmatprep.subr.mxu0 0.0
  %208 = vmatpush1.msra.mxu0 %v55
  %209 = vmatprep.subr.mxu0 0.0
  %210 = vmatpush1.msra.mxu0 %v56
  %211 = vmatprep.subr.mxu0 0.0
  %212 = vmatpush1.msra.mxu0 %v57
  %213 = vmatprep.subr.mxu0 0.0
  %214 = vmatpush1.msra.mxu0 %v58
  %215 = vmatprep.subr.mxu0 0.0
  %216 = vmatpush1.msra.mxu0 %v59
  %217 = vmatprep.subr.mxu0 0.0
  %218 = vmatpush1.msra.mxu0 %v60
  %219 = vmatprep.subr.mxu0 0.0
  %220 = vmatpush1.msra.mxu0 %v61
  %221 = vmatprep.subr.mxu0 0.0
  %222 = vmatpush1.msra.mxu0 %v62
  %223 = vmatprep.subr.mxu0 0.0
  %224 = vmatpush1.msra.mxu0 %v63
  %225 = vmatprep.subr.mxu0 0.0
  %226 = vmatpush1.msra.mxu0 %v64
  %227 = vmatprep.subr.mxu0 0.0
  %228 = vmatpush1.msra.mxu0 %v65
  %229 = vmatprep.subr.mxu0 0.0
  %230 = vmatpush1.msra.mxu0 %v66
  %231 = vmatprep.subr.mxu0 0.0
  %232 = vmatpush1.msra.mxu0 %v67
  %233 = vmatprep.subr.mxu0 0.0
  %234 = vmatpush1.msra.mxu0 %v68
  %235 = vmatprep.subr.mxu0 0.0
  %236 = vmatpush1.msra.mxu0 %v69
  %237 = vmatprep.mubr.f32.mxu0 %v31
  %238 = vmatmul.mubr.f32.gmra.mrb[0].mxu0 %v30
  %v239 = vpop.f32.mrb[0].mxu0
  %v240 = vadd.f32 %v171, %v239
  %v241 = vpop.f32.mrb[0].mxu0
  %242 = vdwg.mxu0
  %243 = vmatprep.subr.mxu0 0.0
  %244 = vmatpush1.msra.mxu0 %v70
  %245 = vmatprep.subr.mxu0 0.0
  %246 = vmatpush1.msra.mxu0 %v71
  %247 = vmatprep.subr.mxu0 0.0
  %248 = vmatpush1.msra.mxu0 %v72
  %249 = vmatprep.subr.mxu0 0.0
  %250 = vmatpush1.msra.mxu0 %v73
  %251 = vmatprep.subr.mxu0 0.0
  %252 = vmatpush1.msra.mxu0 %v74
  %253 = vmatprep.subr.mxu0 0.0
  %254 = vmatpush1.msra.mxu0 %v75
  %255 = vmatprep.subr.mxu0 0.0
  %256 = vmatpush1.msra.mxu0 %v76
  %257 = vmatprep.subr.mxu0 0.0
  %258 = vmatpush1.msra.mxu0 %v77
  %259 = vmatprep.subr.mxu0 0.0
  %260 = vmatpush1.msra.mxu0 %v78
  %261 = vmatprep.subr.mxu0 0.0
  %262 = vmatpush1.msra.mxu0 %v79
  %263 = vmatprep.subr.mxu0 0.0
  %264 = vmatpush1.msra.mxu0 %v80
  %265 = vmatprep.subr.mxu0 0.0
  %266 = vmatpush1.msra.mxu0 %v81
  %267 = vmatprep.subr.mxu0 0.0
  %268 = vmatpush1.msra.mxu0 %v82
  %269 = vmatprep.subr.mxu0 0.0
  %270 = vmatpush1.msra.mxu0 %v83
  %271 = vmatprep.subr.mxu0 0.0
  %272 = vmatpush1.msra.mxu0 %v84
  %273 = vmatprep.subr.mxu0 0.0
  %274 = vmatpush1.msra.mxu0 %v85
  %275 = vmatprep.subr.mxu0 0.0
  %276 = vmatpush1.msra.mxu0 %v86
  %277 = vmatprep.subr.mxu0 0.0
  %278 = vmatpush1.msra.mxu0 %v87
  %279 = vmatprep.subr.mxu0 0.0
  %280 = vmatpush1.msra.mxu0 %v88
  %281 = vmatprep.subr.mxu0 0.0
  %282 = vmatpush1.msra.mxu0 %v89
  %283 = vmatprep.subr.mxu0 0.0
  %284 = vmatpush1.msra.mxu0 %v90
  %285 = vmatprep.subr.mxu0 0.0
  %286 = vmatpush1.msra.mxu0 %v91
  %287 = vmatprep.subr.mxu0 0.0
  %288 = vmatpush1.msra.mxu0 %v92
  %289 = vmatprep.subr.mxu0 0.0
  %290 = vmatpush1.msra.mxu0 %v93
  %291 = vmatprep.subr.mxu0 0.0
  %292 = vmatpush1.msra.mxu0 %v94
  %293 = vmatprep.subr.mxu0 0.0
  %294 = vmatpush1.msra.mxu0 %v95
  %295 = vmatprep.subr.mxu0 0.0
  %296 = vmatpush1.msra.mxu0 %v96
  %297 = vmatprep.subr.mxu0 0.0
  %298 = vmatpush1.msra.mxu0 %v97
  %299 = vmatprep.subr.mxu0 0.0
  %300 = vmatpush1.msra.mxu0 %v98
  %301 = vmatprep.subr.mxu0 0.0
  %302 = vmatpush1.msra.mxu0 %v99
  %303 = vmatprep.subr.mxu0 0.0
  %304 = vmatpush1.msra.mxu0 %v100
  %305 = vmatprep.subr.mxu0 0.0
  %306 = vmatpush1.msra.mxu0 %v101
  %307 = vmatprep.mubr.f32.mxu0 %v33
  %308 = vmatmul.mubr.f32.gmra.mrb[0].mxu0 %v32
  %v309 = vpop.f32.mrb[0].mxu0
  %v310 = vadd.f32 %v240, %v309
  %v311 = vpop.f32.mrb[0].mxu0
  %312 = vdwg.mxu0
  %313 = vmatprep.subr.mxu0 0.0
  %314 = vmatpush1.msra.mxu0 %v102
  %315 = vmatprep.subr.mxu0 0.0
  %316 = vmatpush1.msra.mxu0 %v103
  %317 = vmatprep.subr.mxu0 0.0
  %318 = vmatpush1.msra.mxu0 %v104
  %319 = vmatprep.subr.mxu0 0.0
  %320 = vmatpush1.msra.mxu0 %v105
  %321 = vmatprep.subr.mxu0 0.0
  %322 = vmatpush1.msra.mxu0 %v106
  %323 = vmatprep.subr.mxu0 0.0
  %324 = vmatpush1.msra.mxu0 %v107
  %325 = vmatprep.subr.mxu0 0.0
  %326 = vmatpush1.msra.mxu0 %v108
  %327 = vmatprep.subr.mxu0 0.0
  %328 = vmatpush1.msra.mxu0 %v109
  %329 = vmatprep.subr.mxu0 0.0
  %330 = vmatpush1.msra.mxu0 %v110
  %331 = vmatprep.subr.mxu0 0.0
  %332 = vmatpush1.msra.mxu0 %v111
  %333 = vmatprep.subr.mxu0 0.0
  %334 = vmatpush1.msra.mxu0 %v112
  %335 = vmatprep.subr.mxu0 0.0
  %336 = vmatpush1.msra.mxu0 %v113
  %337 = vmatprep.subr.mxu0 0.0
  %338 = vmatpush1.msra.mxu0 %v114
  %339 = vmatprep.subr.mxu0 0.0
  %340 = vmatpush1.msra.mxu0 %v115
  %341 = vmatprep.subr.mxu0 0.0
  %342 = vmatpush1.msra.mxu0 %v116
  %343 = vmatprep.subr.mxu0 0.0
  %344 = vmatpush1.msra.mxu0 %v117
  %345 = vmatprep.subr.mxu0 0.0
  %346 = vmatpush1.msra.mxu0 %v118
  %347 = vmatprep.subr.mxu0 0.0
  %348 = vmatpush1.msra.mxu0 %v119
  %349 = vmatprep.subr.mxu0 0.0
  %350 = vmatpush1.msra.mxu0 %v120
  %351 = vmatprep.subr.mxu0 0.0
  %352 = vmatpush1.msra.mxu0 %v121
  %353 = vmatprep.subr.mxu0 0.0
  %354 = vmatpush1.msra.mxu0 %v122
  %355 = vmatprep.subr.mxu0 0.0
  %356 = vmatpush1.msra.mxu0 %v123
  %357 = vmatprep.subr.mxu0 0.0
  %358 = vmatpush1.msra.mxu0 %v124
  %359 = vmatprep.subr.mxu0 0.0
  %360 = vmatpush1.msra.mxu0 %v125
  %361 = vmatprep.subr.mxu0 0.0
  %362 = vmatpush1.msra.mxu0 %v126
  %363 = vmatprep.subr.mxu0 0.0
  %364 = vmatpush1.msra.mxu0 %v127
  %365 = vmatprep.subr.mxu0 0.0
  %366 = vmatpush1.msra.mxu0 %v128
  %367 = vmatprep.subr.mxu0 0.0
  %368 = vmatpush1.msra.mxu0 %v129
  %369 = vmatprep.subr.mxu0 0.0
  %370 = vmatpush1.msra.mxu0 %v130
  %371 = vmatprep.subr.mxu0 0.0
  %372 = vmatpush1.msra.mxu0 %v131
  %373 = vmatprep.subr.mxu0 0.0
  %374 = vmatpush1.msra.mxu0 %v132
  %375 = vmatprep.subr.mxu0 0.0
  %376 = vmatpush1.msra.mxu0 %v133
  %377 = vmatprep.mubr.f32.mxu0 %v35
  %378 = vmatmul.mubr.f32.gmra.mrb[0].mxu0 %v34
  %v379 = vpop.f32.mrb[0].mxu0
  %v380 = vadd.f32 %v310, %v379
  %v381 = vpop.f32.mrb[0].mxu0
  %382 = vdwg.mxu0
  %383 = vmatprep.subr.mxu0 0.0
  %384 = vmatpush1.msra.mxu0 %v134
  %385 = vmatprep.subr.mxu0 0.0
  %386 = vmatpush1.msra.mxu0 %v135
  %387 = vmatprep.subr.mxu0 0.0
  %388 = vmatpush1.msra.mxu0 %v136
  %389 = vmatprep.subr.mxu0 0.0
  %390 = vmatpush1.msra.mxu0 %v137
  %391 = vmatprep.subr.mxu0 0.0
  %392 = vmatpush1.msra.mxu0 %v138
  %393 = vmatprep.subr.mxu0 0.0
  %394 = vmatpush1.msra.mxu0 %v139
  %395 = vmatprep.subr.mxu0 0.0
  %396 = vmatpush1.msra.mxu0 %v140
  %397 = vmatprep.subr.mxu0 0.0
  %398 = vmatpush1.msra.mxu0 %v141
  %399 = vmatprep.subr.mxu0 0.0
  %400 = vmatpush1.msra.mxu0 %v142
  %401 = vmatprep.subr.mxu0 0.0
  %402 = vmatpush1.msra.mxu0 %v143
  %403 = vmatprep.subr.mxu0 0.0
  %404 = vmatpush1.msra.mxu0 %v144
  %405 = vmatprep.subr.mxu0 0.0
  %406 = vmatpush1.msra.mxu0 %v145
  %407 = vmatprep.subr.mxu0 0.0
  %408 = vmatpush1.msra.mxu0 %v146
  %409 = vmatprep.subr.mxu0 0.0
  %410 = vmatpush1.msra.mxu0 %v147
  %411 = vmatprep.subr.mxu0 0.0
  %412 = vmatpush1.msra.mxu0 %v148
  %413 = vmatprep.subr.mxu0 0.0
  %414 = vmatpush1.msra.mxu0 %v149
  %415 = vmatprep.subr.mxu0 0.0
  %416 = vmatpush1.msra.mxu0 %v150
  %417 = vmatprep.subr.mxu0 0.0
  %418 = vmatpush1.msra.mxu0 %v151
  %419 = vmatprep.subr.mxu0 0.0
  %420 = vmatpush1.msra.mxu0 %v152
  %421 = vmatprep.subr.mxu0 0.0
  %422 = vmatpush1.msra.mxu0 %v153
  %423 = vmatprep.subr.mxu0 0.0
  %424 = vmatpush1.msra.mxu0 %v154
  %425 = vmatprep.subr.mxu0 0.0
  %426 = vmatpush1.msra.mxu0 %v155
  %427 = vmatprep.subr.mxu0 0.0
  %428 = vmatpush1.msra.mxu0 %v156
  %429 = vmatprep.subr.mxu0 0.0
  %430 = vmatpush1.msra.mxu0 %v157
  %431 = vmatprep.subr.mxu0 0.0
  %432 = vmatpush1.msra.mxu0 %v158
  %433 = vmatprep.subr.mxu0 0.0
  %434 = vmatpush1.msra.mxu0 %v159
  %435 = vmatprep.subr.mxu0 0.0
  %436 = vmatpush1.msra.mxu0 %v160
  %437 = vmatprep.subr.mxu0 0.0
  %438 = vmatpush1.msra.mxu0 %v161
  %439 = vmatprep.subr.mxu0 0.0
  %440 = vmatpush1.msra.mxu0 %v162
  %441 = vmatprep.subr.mxu0 0.0
  %442 = vmatpush1.msra.mxu0 %v163
  %443 = vmatprep.subr.mxu0 0.0
  %444 = vmatpush1.msra.mxu0 %v164
  %445 = vmatprep.subr.mxu0 0.0
  %446 = vmatpush1.msra.mxu0 %v165
  %447 = vmatprep.mubr.f32.mxu0 %v37
  %448 = vmatmul.mubr.f32.gmra.mrb[0].mxu0 %v36
  %v449 = vpop.f32.mrb[0].mxu0
  %v450 = vadd.f32 %v380, %v449
  %v451 = vpop.f32.mrb[0].mxu0
  %452 = vdwg.mxu0
  %v453 = vmax.f32 %v450, 0.0
  %v454 = vld [vmem:[%s3] sm:$0xff]
  %v455 = vld [vmem:[%s3 + $0x8] sm:$0xff]
  %v456 = vld [vmem:[%s3 + $0x10] sm:$0xff]
  %v457 = vld [vmem:[%s3 + $0x18] sm:$0xff]
  %v458 = vld [vmem:[%s4] sm:$0x1]
  %v460 = vlaneseq
  %v461 = vshrl.u32 %v460, 7
  %v462 = vsub.s32 0, %v461
  %v463 = vrot.slane %v458, %v462
  %vm465 = vcmask 261120
  %v467 = vsel %vm465, %v453, 0
  %469 = vmatprep.subr.mxu0 0.0
  %470 = vmatpush1.msra.mxu0 %v454
  %471 = vmatprep.subr.mxu0 0.0
  %472 = vmatpush1.msra.mxu0 %v455
  %473 = vmatprep.subr.mxu0 0.0
  %474 = vmatpush1.msra.mxu0 %v456
  %475 = vmatprep.subr.mxu0 0.0
  %476 = vmatpush1.msra.mxu0 %v457
  %477 = vmatprep.subr.mxu0 0.0
  %478 = vmatpush1.msra.mxu0 0.0
  %479 = vmatprep.subr.mxu0 0.0
  %480 = vmatpush1.msra.mxu0 0.0
  %481 = vmatprep.subr.mxu0 0.0
  %482 = vmatpush1.msra.mxu0 0.0
  %483 = vmatprep.subr.mxu0 0.0
  %484 = vmatpush1.msra.mxu0 0.0
  %485 = vmatprep.subr.mxu0 0.0
  %486 = vmatpush1.msra.mxu0 0.0
  %487 = vmatprep.subr.mxu0 0.0
  %488 = vmatpush1.msra.mxu0 0.0
  %489 = vmatprep.subr.mxu0 0.0
  %490 = vmatpush1.msra.mxu0 0.0
  %491 = vmatprep.subr.mxu0 0.0
  %492 = vmatpush1.msra.mxu0 0.0
  %493 = vmatprep.subr.mxu0 0.0
  %494 = vmatpush1.msra.mxu0 0.0
  %495 = vmatprep.subr.mxu0 0.0
  %496 = vmatpush1.msra.mxu0 0.0
  %497 = vmatprep.subr.mxu0 0.0
  %498 = vmatpush1.msra.mxu0 0.0
  %499 = vmatprep.subr.mxu0 0.0
  %500 = vmatpush1.msra.mxu0 0.0
  %501 = vmatprep.subr.mxu0 0.0
  %502 = vmatpush1.msra.mxu0 0.0
  %503 = vmatprep.subr.mxu0 0.0
  %504 = vmatpush1.msra.mxu0 0.0
  %505 = vmatprep.subr.mxu0 0.0
  %506 = vmatpush1.msra.mxu0 0.0
  %507 = vmatprep.subr.mxu0 0.0
  %508 = vmatpush1.msra.mxu0 0.0
  %509 = vmatprep.subr.mxu0 0.0
  %510 = vmatpush1.msra.mxu0 0.0
  %511 = vmatprep.subr.mxu0 0.0
  %512 = vmatpush1.msra.mxu0 0.0
  %513 = vmatprep.subr.mxu0 0.0
  %514 = vmatpush1.msra.mxu0 0.0
  %515 = vmatprep.subr.mxu0 0.0
  %516 = vmatpush1.msra.mxu0 0.0
  %517 = vmatprep.subr.mxu0 0.0
  %518 = vmatpush1.msra.mxu0 0.0
  %519 = vmatprep.subr.mxu0 0.0
  %520 = vmatpush1.msra.mxu0 0.0
  %521 = vmatprep.subr.mxu0 0.0
  %522 = vmatpush1.msra.mxu0 0.0
  %523 = vmatprep.subr.mxu0 0.0
  %524 = vmatpush1.msra.mxu0 0.0
  %525 = vmatprep.subr.mxu0 0.0
  %526 = vmatpush1.msra.mxu0 0.0
  %527 = vmatprep.subr.mxu0 0.0
  %528 = vmatpush1.msra.mxu0 0.0
  %529 = vmatprep.subr.mxu0 0.0
  %530 = vmatpush1.msra.mxu0 0.0
  %531 = vmatprep.subr.mxu0 0.0
  %532 = vmatpush1.msra.mxu0 0.0
  %533 = vmatprep.mubr.f32.mxu0 0.0
  %534 = vmatmul.mubr.f32.gmra.mrb[0].mxu0 %v467
  %v535 = vpop.f32.mrb[0].mxu0
  %v536 = vadd.f32 %v463, %v535
  %v537 = vpop.f32.mrb[0].mxu0
  %538 = vdwg.mxu0
  %v539 = vmax.f32 %v536, 0.0
  %v540 = vld [vmem:[%s5] sm:$0xff]
  %v541 = vld [vmem:[%s5 + $0x8] sm:$0xff]
  %v542 = vld [vmem:[%s6] sm:$0x1]
  %v544 = vlaneseq
  %v545 = vshrl.u32 %v544, 7
  %v546 = vsub.s32 0, %v545
  %v547 = vrot.slane %v542, %v546
  %vm549 = vcmask 130048
  %v551 = vsel %vm549, %v539, 0
  %553 = vmatprep.subr.mxu0 0.0
  %554 = vmatpush1.msra.mxu0 %v540
  %555 = vmatprep.subr.mxu0 0.0
  %556 = vmatpush1.msra.mxu0 %v541
  %557 = vmatprep.subr.mxu0 0.0
  %558 = vmatpush1.msra.mxu0 0.0
  %559 = vmatprep.subr.mxu0 0.0
  %560 = vmatpush1.msra.mxu0 0.0
  %561 = vmatprep.subr.mxu0 0.0
  %562 = vmatpush1.msra.mxu0 0.0
  %563 = vmatprep.subr.mxu0 0.0
  %564 = vmatpush1.msra.mxu0 0.0
  %565 = vmatprep.subr.mxu0 0.0
  %566 = vmatpush1.msra.mxu0 0.0
  %567 = vmatprep.subr.mxu0 0.0
  %568 = vmatpush1.msra.mxu0 0.0
  %569 = vmatprep.subr.mxu0 0.0
  %570 = vmatpush1.msra.mxu0 0.0
  %571 = vmatprep.subr.mxu0 0.0
  %572 = vmatpush1.msra.mxu0 0.0
  %573 = vmatprep.subr.mxu0 0.0
  %574 = vmatpush1.msra.mxu0 0.0
  %575 = vmatprep.subr.mxu0 0.0
  %576 = vmatpush1.msra.mxu0 0.0
  %577 = vmatprep.subr.mxu0 0.0
  %578 = vmatpush1.msra.mxu0 0.0
  %579 = vmatprep.subr.mxu0 0.0
  %580 = vmatpush1.msra.mxu0 0.0
  %581 = vmatprep.subr.mxu0 0.0
  %582 = vmatpush1.msra.mxu0 0.0
  %583 = vmatprep.subr.mxu0 0.0
  %584 = vmatpush1.msra.mxu0 0.0
  %585 = vmatprep.subr.mxu0 0.0
  %586 = vmatpush1.msra.mxu0 0.0
  %587 = vmatprep.subr.mxu0 0.0
  %588 = vmatpush1.msra.mxu0 0.0
  %589 = vmatprep.subr.mxu0 0.0
  %590 = vmatpush1.msra.mxu0 0.0
  %591 = vmatprep.subr.mxu0 0.0
  %592 = vmatpush1.msra.mxu0 0.0
  %593 = vmatprep.subr.mxu0 0.0
  %594 = vmatpush1.msra.mxu0 0.0
  %595 = vmatprep.subr.mxu0 0.0
  %596 = vmatpush1.msra.mxu0 0.0
  %597 = vmatprep.subr.mxu0 0.0
  %598 = vmatpush1.msra.mxu0 0.0
  %599 = vmatprep.subr.mxu0 0.0
  %600 = vmatpush1.msra.mxu0 0.0
  %601 = vmatprep.subr.mxu0 0.0
  %602 = vmatpush1.msra.mxu0 0.0
  %603 = vmatprep.subr.mxu0 0.0
  %604 = vmatpush1.msra.mxu0 0.0
  %605 = vmatprep.subr.mxu0 0.0
  %606 = vmatpush1.msra.mxu0 0.0
  %607 = vmatprep.subr.mxu0 0.0
  %608 = vmatpush1.msra.mxu0 0.0
  %609 = vmatprep.subr.mxu0 0.0
  %610 = vmatpush1.msra.mxu0 0.0
  %611 = vmatprep.subr.mxu0 0.0
  %612 = vmatpush1.msra.mxu0 0.0
  %613 = vmatprep.subr.mxu0 0.0
  %614 = vmatpush1.msra.mxu0 0.0
  %615 = vmatprep.subr.mxu0 0.0
  %616 = vmatpush1.msra.mxu0 0.0
  %617 = vmatprep.mubr.f32.mxu0 0.0
  %618 = vmatmul.mubr.f32.gmra.mrb[0].mxu0 %v551
  %v619 = vpop.f32.mrb[0].mxu0
  %v620 = vadd.f32 %v547, %v619
  %v621 = vpop.f32.mrb[0].mxu0
  %622 = vdwg.mxu0
  %vm623 = vcmask 31744
  %624 = vst.msk [vmem:[%s7] sm:$0xff] %vm623, %v620
  // Predicated region
  $region30: #{tpu_custom_call.1} parent=0 // pred_check
    _
  $region31: #{tpu_custom_call.1} parent=0 // pred_check_branch
    %626 = sbr.rel (0) target = $region33
  $region32: #{tpu_custom_call.1} parent=0 // pred_region
    _
  $region33: #{tpu_custom_call.1} parent=0 // pred_fallthru
    _
  // Predicated region
  $region34: #{tpu_custom_call.1} parent=0 // pred_check
    _
  $region35: #{tpu_custom_call.1} parent=0 // pred_check_branch
    %628 = sbr.rel (0) target = $region37
  $region36: #{tpu_custom_call.1} parent=0 // pred_region
    _
  $region37: #{tpu_custom_call.1} parent=0 // pred_fallthru
    _

</llo_original>
